<compile_context>
chip_gen: v7x
topology: tpu7x:2x2x1
jax: 0.10.0
libtpu: 0.0.40
codegen_flags: <defaults>
</compile_context>

<pallas_src>
import functools

import jax
import jax.numpy as jnp
from jax.experimental import pallas as pl
from jax.experimental.pallas import tpu as pltpu

LANES = 128
SUBLANES = 8
DEFAULT_BLOCK_ROWS = 1024  # (1024, 128) f32 tile = 512 KiB per input per buffer


def _num_partitions():
    """2-way megacore split only on multi-TensorCore chips (v7x); 1 elsewhere."""
    try:
        kind = jax.devices()[0].device_kind.lower()
    except Exception:
        return 1
    return 2 if "v7" in kind else 1


def _rh_loss_kernel(out_ref, tgt_ref, sum_out_ref, cnt_out_ref, sum_acc, cnt_acc,
                    *, max_disp, total_rows, block_rows, blocks_per_part):
    part = pl.program_id(0)
    step = pl.program_id(1)

    @pl.when(step == 0)
    def _():
        sum_acc[...] = jnp.zeros_like(sum_acc)
        cnt_acc[...] = jnp.zeros_like(cnt_acc)

    o = out_ref[...].astype(jnp.float32)
    t = tgt_ref[...].astype(jnp.float32)

    def accumulate(mask):
        d = jnp.abs(o - t)
        elem = jnp.where(d < 1.0, 0.5 * d * d, d - 0.5)
        elem = jnp.where(mask, elem, 0.0)           # select: garbage never propagates
        cnt = jnp.where(mask, 1.0, 0.0)
        # Vreg-wise reduction of the tile to one (8, 128) chunk: pure VALU adds
        # (no XLU), then a single small accumulator update per step.
        sum_acc[...] += elem.reshape(-1, SUBLANES, LANES).sum(axis=0)
        cnt_acc[...] += cnt.reshape(-1, SUBLANES, LANES).sum(axis=0)

    # Unclamped linear block index. Only the block straddling the end of the
    # valid rows and the duplicated overflow block (2-way split, odd block
    # count) need the row-validity mask; interior blocks skip the iota work.
    linear_block = part * blocks_per_part + step
    is_edge = (linear_block + 1) * block_rows > total_rows

    @pl.when(jnp.logical_not(is_edge))
    def _():
        accumulate(t < jnp.float32(max_disp))

    @pl.when(is_edge)
    def _():
        row_ids = jax.lax.broadcasted_iota(jnp.int32, (block_rows, LANES), 0)
        valid = (linear_block * block_rows + row_ids) < total_rows
        accumulate(jnp.logical_and(t < jnp.float32(max_disp), valid))

    @pl.when(step == pl.num_programs(1) - 1)
    def _():
        sum_out_ref[...] = sum_acc[...].reshape(1, SUBLANES, LANES)
        cnt_out_ref[...] = cnt_acc[...].reshape(1, SUBLANES, LANES)


def _masked_smoothl1_sum_count(o, t, max_disp):
    """Plain-JAX partial sum/count (used for the <128-element tail)."""
    o = o.astype(jnp.float32)
    t = t.astype(jnp.float32)
    mask = t < jnp.float32(max_disp)
    d = jnp.abs(o - t)
    elem = jnp.where(d < 1.0, 0.5 * d * d, d - 0.5)
    elem = jnp.where(mask, elem, 0.0)
    return jnp.sum(elem), jnp.sum(mask.astype(jnp.float32))


def rh_loss(output, target, max_disp):
    """Masked SmoothL1 mean loss; hot path in a Pallas TPU kernel."""
    assert output.shape == target.shape

    n = int(output.size)
    o_flat = output.reshape(-1)          # no dtype cast in the wrapper
    t_flat = target.reshape(-1)

    n_main = (n // LANES) * LANES
    if n_main == 0:
        s, c = _masked_smoothl1_sum_count(o_flat, t_flat, max_disp)
        return (s / c).astype(jnp.float32)

    # Kernel runs on the 128-aligned prefix (no copy in the common aligned
    # case); the tiny tail is handled by a plain-JAX epilogue below.
    if n_main == n:
        o_main, t_main = o_flat, t_flat
    else:
        o_main, t_main = o_flat[:n_main], t_flat[:n_main]

    rows = n_main // LANES
    o2d = o_main.reshape(rows, LANES)
    t2d = t_main.reshape(rows, LANES)

    block_rows = min(DEFAULT_BLOCK_ROWS,
                     ((rows + SUBLANES - 1) // SUBLANES) * SUBLANES)
    num_blocks = pl.cdiv(rows, block_rows)
    num_parts = min(_num_partitions(), num_blocks)
    blocks_per_part = pl.cdiv(num_blocks, num_parts)
    grid = (num_parts, blocks_per_part)

    def in_map(c, i):
        # Clamp so overflow steps never index a fully out-of-bounds block;
        # their contribution is masked out in-kernel via the edge path.
        return (jnp.minimum(c * blocks_per_part + i, num_blocks - 1), 0)

    kernel = functools.partial(
        _rh_loss_kernel,
        max_disp=float(max_disp),  # max_disp is a static module-init scalar
        total_rows=rows,
        block_rows=block_rows,
        blocks_per_part=blocks_per_part,
    )

    itemsize = output.dtype.itemsize + target.dtype.itemsize
    cost = pl.CostEstimate(
        flops=6 * n_main,
        transcendentals=0,
        bytes_accessed=int(n_main * itemsize
                           + num_parts * 2 * SUBLANES * LANES * 4),
    )

    sums, cnts = pl.pallas_call(
        kernel,
        out_shape=(
            jax.ShapeDtypeStruct((num_parts, SUBLANES, LANES), jnp.float32),
            jax.ShapeDtypeStruct((num_parts, SUBLANES, LANES), jnp.float32),
        ),
        grid_spec=pltpu.PrefetchScalarGridSpec(
            num_scalar_prefetch=0,
            grid=grid,
            in_specs=[
                pl.BlockSpec((block_rows, LANES), in_map),
                pl.BlockSpec((block_rows, LANES), in_map),
            ],
            out_specs=[
                pl.BlockSpec((1, SUBLANES, LANES), lambda c, i: (c, 0, 0)),
                pl.BlockSpec((1, SUBLANES, LANES), lambda c, i: (c, 0, 0)),
            ],
            scratch_shapes=[
                pltpu.VMEM((SUBLANES, LANES), jnp.float32),
                pltpu.VMEM((SUBLANES, LANES), jnp.float32),
            ],
        ),
        compiler_params=pltpu.CompilerParams(
            dimension_semantics=("parallel", "arbitrary"),
        ),
        cost_estimate=cost,
    )(o2d, t2d)

    total_sum = jnp.sum(sums)
    total_cnt = jnp.sum(cnts)
    if n_main != n:
        ts, tc = _masked_smoothl1_sum_count(o_flat[n_main:], t_flat[n_main:], max_disp)
        total_sum = total_sum + ts
        total_cnt = total_cnt + tc
    # Mean over masked elements (scalar glue). count == 0 -> NaN, matching
    # PyTorch's mean over an empty selection.
    return (total_sum / total_cnt).astype(jnp.float32)


def _reference_rh_loss(output, target, max_disp):
    """Plain-JAX reference for sanity checking."""
    mask = target < max_disp
    d = jnp.abs(output - target)
    elem = jnp.where(d < 1.0, 0.5 * d * d, d - 0.5)
    elem = jnp.where(mask, elem, 0.0)
    return jnp.sum(elem) / jnp.sum(mask.astype(jnp.float32))


if __name__ == "__main__":
    max_disp = 4.0  # RHLoss(max_disp=4)
    key = jax.random.PRNGKey(0)
    k1, k2, k3, k4 = jax.random.split(key, 4)

    # Case 1: NCHW-like disparity volume, 128-aligned element count.
    shape = (2, 4, 16, 16)
    target = jax.random.uniform(k1, shape, jnp.float32, 0.0, 2.0 * max_disp)
    output = target + jax.random.normal(k2, shape, jnp.float32) * 2.0

    loss = jax.block_until_ready(rh_loss(output, target, max_disp))
    ref = jax.block_until_ready(_reference_rh_loss(output, target, max_disp))
    assert jnp.allclose(loss, ref, rtol=1e-5, atol=1e-6), (loss, ref)

    # Case 2: odd-sized tensor (not a multiple of 128) to exercise the
    # partial-block edge path in-kernel and the plain-JAX tail epilogue.
    shape2 = (3, 5, 7, 11)
    target2 = jax.random.uniform(k3, shape2, jnp.float32, 0.0, 2.0 * max_disp)
    output2 = target2 + jax.random.normal(k4, shape2, jnp.float32) * 2.0

    loss2 = jax.block_until_ready(rh_loss(output2, target2, max_disp))
    ref2 = jax.block_until_ready(_reference_rh_loss(output2, target2, max_disp))
    assert jnp.allclose(loss2, ref2, rtol=1e-5, atol=1e-6), (loss2, ref2)

    print("KERNEL_OK")
</pallas_src>

<mosaic_0001>
module attributes {stable_mosaic.version = 11 : i64} {
  func.func @_rh_loss_kernel(%arg0: i32, %arg1: i32, %arg2: memref<16x128xf32, #tpu.memory_space<vmem>>, %arg3: memref<16x128xf32, #tpu.memory_space<vmem>>, %arg4: memref<1x8x128xf32, #tpu.memory_space<vmem>>, %arg5: memref<1x8x128xf32, #tpu.memory_space<vmem>>, %arg6: memref<8x128xf32, #tpu.memory_space<vmem>>, %arg7: memref<8x128xf32, #tpu.memory_space<vmem>>) attributes {dimension_semantics = [#tpu.dimension_semantics<parallel>, #tpu.dimension_semantics<arbitrary>], iteration_bounds = array<i64: 1, 1>, scalar_prefetch = 0 : i64, scratch_operands = 2 : i64, tpu.core_type = #tpu.core_type<tc>, window_params = [{transform_indices = @transform_0, window_bounds = array<i64: 16, 128>}, {transform_indices = @transform_1, window_bounds = array<i64: 16, 128>}, {transform_indices = @transform_2, window_bounds = array<i64: 1, 8, 128>}, {transform_indices = @transform_3, window_bounds = array<i64: 1, 8, 128>}]} {
    %c0_i32 = arith.constant 0 : i32
    %0 = arith.cmpi eq, %arg1, %c0_i32 : i32
    %1 = arith.extui %0 : i1 to i32
    %c0_i32_0 = arith.constant 0 : i32
    %2 = arith.cmpi ne, %1, %c0_i32_0 : i32
    scf.if %2 {
      %cst = arith.constant 0.000000e+00 : f32
      %18 = vector.broadcast %cst : f32 to vector<8x128xf32>
      %c0_10 = arith.constant 0 : index
      %c0_11 = arith.constant 0 : index
      %19 = vector.load %arg6[%c0_10, %c0_11] : memref<8x128xf32, #tpu.memory_space<vmem>>, vector<8x128xf32>
      tpu.vector_store %arg6[%c0_10, %c0_11], %18 {strides = array<i32>} : memref<8x128xf32, #tpu.memory_space<vmem>>, vector<8x128xf32>,
      %cst_12 = arith.constant 0.000000e+00 : f32
      %20 = vector.broadcast %cst_12 : f32 to vector<8x128xf32>
      %c0_13 = arith.constant 0 : index
      %c0_14 = arith.constant 0 : index
      %21 = vector.load %arg7[%c0_13, %c0_14] : memref<8x128xf32, #tpu.memory_space<vmem>>, vector<8x128xf32>
      tpu.vector_store %arg7[%c0_13, %c0_14], %20 {strides = array<i32>} : memref<8x128xf32, #tpu.memory_space<vmem>>, vector<8x128xf32>,
    } else {
    }
    %c0 = arith.constant 0 : index
    %c0_1 = arith.constant 0 : index
    %3 = vector.load %arg2[%c0, %c0_1] : memref<16x128xf32, #tpu.memory_space<vmem>>, vector<16x128xf32>
    %c0_2 = arith.constant 0 : index
    %c0_3 = arith.constant 0 : index
    %4 = vector.load %arg3[%c0_2, %c0_3] : memref<16x128xf32, #tpu.memory_space<vmem>>, vector<16x128xf32>
    %c1_i32 = arith.constant 1 : i32
    %5 = arith.muli %arg0, %c1_i32 : i32
    %6 = arith.addi %5, %arg1 : i32
    %c1_i32_4 = arith.constant 1 : i32
    %7 = arith.addi %6, %c1_i32_4 : i32
    %c16_i32 = arith.constant 16 : i32
    %8 = arith.muli %7, %c16_i32 : i32
    %c16_i32_5 = arith.constant 16 : i32
    %9 = arith.cmpi sgt, %8, %c16_i32_5 : i32
    %true = arith.constant true
    %10 = arith.xori %9, %true : i1
    %11 = arith.extui %10 : i1 to i32
    %c0_i32_6 = arith.constant 0 : i32
    %12 = arith.cmpi ne, %11, %c0_i32_6 : i32
    scf.if %12 {
      %cst = arith.constant 4.000000e+00 : f32
      %18 = vector.broadcast %cst : f32 to vector<16x128xf32>
      %19 = arith.cmpf olt, %4, %18 : vector<16x128xf32>
      %20 = arith.subf %3, %4 : vector<16x128xf32>
      %21 = math.absf %20 : vector<16x128xf32>
      %cst_10 = arith.constant 1.000000e+00 : f32
      %22 = vector.broadcast %cst_10 : f32 to vector<16x128xf32>
      %23 = arith.cmpf olt, %21, %22 : vector<16x128xf32>
      %cst_11 = arith.constant 5.000000e-01 : f32
      %24 = vector.broadcast %cst_11 : f32 to vector<16x128xf32>
      %25 = arith.mulf %24, %21 : vector<16x128xf32>
      %26 = arith.mulf %25, %21 : vector<16x128xf32>
      %cst_12 = arith.constant 5.000000e-01 : f32
      %27 = vector.broadcast %cst_12 : f32 to vector<16x128xf32>
      %28 = arith.subf %21, %27 : vector<16x128xf32>
      %29 = arith.select %23, %26, %28 : vector<16x128xi1>, vector<16x128xf32>
      %cst_13 = arith.constant 0.000000e+00 : f32
      %30 = vector.broadcast %cst_13 : f32 to vector<16x128xf32>
      %31 = arith.select %19, %29, %30 : vector<16x128xi1>, vector<16x128xf32>
      %cst_14 = arith.constant 1.000000e+00 : f32
      %cst_15 = arith.constant 0.000000e+00 : f32
      %32 = vector.broadcast %cst_14 : f32 to vector<16x128xf32>
      %33 = vector.broadcast %cst_15 : f32 to vector<16x128xf32>
      %34 = arith.select %19, %32, %33 : vector<16x128xi1>, vector<16x128xf32>
      %c0_16 = arith.constant 0 : index
      %c0_17 = arith.constant 0 : index
      %35 = vector.load %arg6[%c0_16, %c0_17] : memref<8x128xf32, #tpu.memory_space<vmem>>, vector<8x128xf32>
      %36 = vector.shape_cast %31 : vector<16x128xf32> to vector<2x8x128xf32>
      %cst_18 = arith.constant dense<0.000000e+00> : vector<8x128xf32>
      %37 = vector.multi_reduction <add>, %36, %cst_18 [0] : vector<2x8x128xf32> to vector<8x128xf32>
      %38 = arith.addf %35, %37 : vector<8x128xf32>
      %c0_19 = arith.constant 0 : index
      %c0_20 = arith.constant 0 : index
      %39 = vector.load %arg6[%c0_19, %c0_20] : memref<8x128xf32, #tpu.memory_space<vmem>>, vector<8x128xf32>
      tpu.vector_store %arg6[%c0_19, %c0_20], %38 {strides = array<i32>} : memref<8x128xf32, #tpu.memory_space<vmem>>, vector<8x128xf32>,
      %c0_21 = arith.constant 0 : index
      %c0_22 = arith.constant 0 : index
      %40 = vector.load %arg7[%c0_21, %c0_22] : memref<8x128xf32, #tpu.memory_space<vmem>>, vector<8x128xf32>
      %41 = vector.shape_cast %34 : vector<16x128xf32> to vector<2x8x128xf32>
      %cst_23 = arith.constant dense<0.000000e+00> : vector<8x128xf32>
      %42 = vector.multi_reduction <add>, %41, %cst_23 [0] : vector<2x8x128xf32> to vector<8x128xf32>
      %43 = arith.addf %40, %42 : vector<8x128xf32>
      %c0_24 = arith.constant 0 : index
      %c0_25 = arith.constant 0 : index
      %44 = vector.load %arg7[%c0_24, %c0_25] : memref<8x128xf32, #tpu.memory_space<vmem>>, vector<8x128xf32>
      tpu.vector_store %arg7[%c0_24, %c0_25], %43 {strides = array<i32>} : memref<8x128xf32, #tpu.memory_space<vmem>>, vector<8x128xf32>,
    } else {
    }
    %13 = arith.extui %9 : i1 to i32
    %c0_i32_7 = arith.constant 0 : i32
    %14 = arith.cmpi ne, %13, %c0_i32_7 : i32
    scf.if %14 {
      %18 = tpu.iota {dimensions = array<i32: 0>} : vector<16x128xi32>
      %c16_i32_10 = arith.constant 16 : i32
      %19 = arith.muli %6, %c16_i32_10 : i32
      %20 = vector.broadcast %19 : i32 to vector<16x128xi32>
      %21 = arith.addi %20, %18 : vector<16x128xi32>
      %c16_i32_11 = arith.constant 16 : i32
      %22 = vector.broadcast %c16_i32_11 : i32 to vector<16x128xi32>
      %23 = arith.cmpi slt, %21, %22 : vector<16x128xi32>
      %cst = arith.constant 4.000000e+00 : f32
      %24 = vector.broadcast %cst : f32 to vector<16x128xf32>
      %25 = arith.cmpf olt, %4, %24 : vector<16x128xf32>
      %26 = arith.andi %25, %23 : vector<16x128xi1>
      %27 = arith.subf %3, %4 : vector<16x128xf32>
      %28 = math.absf %27 : vector<16x128xf32>
      %cst_12 = arith.constant 1.000000e+00 : f32
      %29 = vector.broadcast %cst_12 : f32 to vector<16x128xf32>
      %30 = arith.cmpf olt, %28, %29 : vector<16x128xf32>
      %cst_13 = arith.constant 5.000000e-01 : f32
      %31 = vector.broadcast %cst_13 : f32 to vector<16x128xf32>
      %32 = arith.mulf %31, %28 : vector<16x128xf32>
      %33 = arith.mulf %32, %28 : vector<16x128xf32>
      %cst_14 = arith.constant 5.000000e-01 : f32
      %34 = vector.broadcast %cst_14 : f32 to vector<16x128xf32>
      %35 = arith.subf %28, %34 : vector<16x128xf32>
      %36 = arith.select %30, %33, %35 : vector<16x128xi1>, vector<16x128xf32>
      %cst_15 = arith.constant 0.000000e+00 : f32
      %37 = vector.broadcast %cst_15 : f32 to vector<16x128xf32>
      %38 = arith.select %26, %36, %37 : vector<16x128xi1>, vector<16x128xf32>
      %cst_16 = arith.constant 1.000000e+00 : f32
      %cst_17 = arith.constant 0.000000e+00 : f32
      %39 = vector.broadcast %cst_16 : f32 to vector<16x128xf32>
      %40 = vector.broadcast %cst_17 : f32 to vector<16x128xf32>
      %41 = arith.select %26, %39, %40 : vector<16x128xi1>, vector<16x128xf32>
      %c0_18 = arith.constant 0 : index
      %c0_19 = arith.constant 0 : index
      %42 = vector.load %arg6[%c0_18, %c0_19] : memref<8x128xf32, #tpu.memory_space<vmem>>, vector<8x128xf32>
      %43 = vector.shape_cast %38 : vector<16x128xf32> to vector<2x8x128xf32>
      %cst_20 = arith.constant dense<0.000000e+00> : vector<8x128xf32>
      %44 = vector.multi_reduction <add>, %43, %cst_20 [0] : vector<2x8x128xf32> to vector<8x128xf32>
      %45 = arith.addf %42, %44 : vector<8x128xf32>
      %c0_21 = arith.constant 0 : index
      %c0_22 = arith.constant 0 : index
      %46 = vector.load %arg6[%c0_21, %c0_22] : memref<8x128xf32, #tpu.memory_space<vmem>>, vector<8x128xf32>
      tpu.vector_store %arg6[%c0_21, %c0_22], %45 {strides = array<i32>} : memref<8x128xf32, #tpu.memory_space<vmem>>, vector<8x128xf32>,
      %c0_23 = arith.constant 0 : index
      %c0_24 = arith.constant 0 : index
      %47 = vector.load %arg7[%c0_23, %c0_24] : memref<8x128xf32, #tpu.memory_space<vmem>>, vector<8x128xf32>
      %48 = vector.shape_cast %41 : vector<16x128xf32> to vector<2x8x128xf32>
      %cst_25 = arith.constant dense<0.000000e+00> : vector<8x128xf32>
      %49 = vector.multi_reduction <add>, %48, %cst_25 [0] : vector<2x8x128xf32> to vector<8x128xf32>
      %50 = arith.addf %47, %49 : vector<8x128xf32>
      %c0_26 = arith.constant 0 : index
      %c0_27 = arith.constant 0 : index
      %51 = vector.load %arg7[%c0_26, %c0_27] : memref<8x128xf32, #tpu.memory_space<vmem>>, vector<8x128xf32>
      tpu.vector_store %arg7[%c0_26, %c0_27], %50 {strides = array<i32>} : memref<8x128xf32, #tpu.memory_space<vmem>>, vector<8x128xf32>,
    } else {
    }
    %c0_i32_8 = arith.constant 0 : i32
    %15 = arith.cmpi eq, %arg1, %c0_i32_8 : i32
    %16 = arith.extui %15 : i1 to i32
    %c0_i32_9 = arith.constant 0 : i32
    %17 = arith.cmpi ne, %16, %c0_i32_9 : i32
    scf.if %17 {
      %c0_10 = arith.constant 0 : index
      %c0_11 = arith.constant 0 : index
      %18 = vector.load %arg6[%c0_10, %c0_11] : memref<8x128xf32, #tpu.memory_space<vmem>>, vector<8x128xf32>
      %19 = vector.shape_cast %18 : vector<8x128xf32> to vector<1x8x128xf32>
      %c0_12 = arith.constant 0 : index
      %c0_13 = arith.constant 0 : index
      %c0_14 = arith.constant 0 : index
      %20 = vector.load %arg4[%c0_12, %c0_13, %c0_14] : memref<1x8x128xf32, #tpu.memory_space<vmem>>, vector<1x8x128xf32>
      tpu.vector_store %arg4[%c0_12, %c0_13, %c0_14], %19 {strides = array<i32>} : memref<1x8x128xf32, #tpu.memory_space<vmem>>, vector<1x8x128xf32>,
      %c0_15 = arith.constant 0 : index
      %c0_16 = arith.constant 0 : index
      %21 = vector.load %arg7[%c0_15, %c0_16] : memref<8x128xf32, #tpu.memory_space<vmem>>, vector<8x128xf32>
      %22 = vector.shape_cast %21 : vector<8x128xf32> to vector<1x8x128xf32>
      %c0_17 = arith.constant 0 : index
      %c0_18 = arith.constant 0 : index
      %c0_19 = arith.constant 0 : index
      %23 = vector.load %arg5[%c0_17, %c0_18, %c0_19] : memref<1x8x128xf32, #tpu.memory_space<vmem>>, vector<1x8x128xf32>
      tpu.vector_store %arg5[%c0_17, %c0_18, %c0_19], %22 {strides = array<i32>} : memref<1x8x128xf32, #tpu.memory_space<vmem>>, vector<1x8x128xf32>,
    } else {
    }
    return
  }
  func.func @transform_0(%arg0: i32, %arg1: i32) -> (i32, i32) {
    %c1_i32 = arith.constant 1 : i32
    %0 = arith.muli %arg0, %c1_i32 : i32
    %1 = arith.addi %0, %arg1 : i32
    %c0_i32 = arith.constant 0 : i32
    %2 = arith.minsi %1, %c0_i32 : i32
    %c0_i32_0 = arith.constant 0 : i32
    %c0_i32_1 = arith.constant 0 : i32
    return %2, %c0_i32_0 : i32, i32
  }
  func.func @transform_1(%arg0: i32, %arg1: i32) -> (i32, i32) {
    %c1_i32 = arith.constant 1 : i32
    %0 = arith.muli %arg0, %c1_i32 : i32
    %1 = arith.addi %0, %arg1 : i32
    %c0_i32 = arith.constant 0 : i32
    %2 = arith.minsi %1, %c0_i32 : i32
    %c0_i32_0 = arith.constant 0 : i32
    %c0_i32_1 = arith.constant 0 : i32
    return %2, %c0_i32_0 : i32, i32
  }
  func.func @transform_2(%arg0: i32, %arg1: i32) -> (i32, i32, i32) {
    %c0_i32 = arith.constant 0 : i32
    %c0_i32_0 = arith.constant 0 : i32
    %c0_i32_1 = arith.constant 0 : i32
    return %arg0, %c0_i32, %c0_i32_0 : i32, i32, i32
  }
  func.func @transform_3(%arg0: i32, %arg1: i32) -> (i32, i32, i32) {
    %c0_i32 = arith.constant 0 : i32
    %c0_i32_0 = arith.constant 0 : i32
    %c0_i32_1 = arith.constant 0 : i32
    return %arg0, %c0_i32, %c0_i32_0 : i32, i32, i32
  }
}

</mosaic_0001>

<llo_original>
// kernel: tpu_custom_call.1
$region0: #{tpu_custom_call.1}
  #allocation0 [shape = 'u32[]', space=smem, size = 0x4, offset = 0x4, fixed_abs, tag = 'smem constant byte address 0x4 - core index']
  #allocation1 [shape = 'u32[144,128]{1,0:T(1,128)}', space=vmem, size = 0x12000, scoped, tag = 'internal scratch']
  #allocation2 [shape = 'f32[8,128]{1,0:T(8,128)}', space=vmem, size = 0x1000, scoped, tag = 'scratch operand']
  #allocation3 [shape = 'f32[8,128]{1,0:T(8,128)}', space=vmem, size = 0x1000, scoped, tag = 'scratch operand']
  %s0 = inlined_call_operand.hbm [shape: f32[16,128], index: 0, kind: input, shape index: {}]
  %s1 = inlined_call_operand.hbm [shape: f32[16,128], index: 1, kind: input, shape index: {}]
  %s2 = inlined_call_operand.hbm [shape: f32[1,8,128], index: 2, kind: output, shape index: {0}]
  %s3 = inlined_call_operand.hbm [shape: f32[1,8,128], index: 3, kind: output, shape index: {1}]
  %4 = xla_tuple %s2, %s3
  %s5 = sld [smem:[#allocation0]]
  $region50: #{tpu_custom_call.1} parent=0
    _
  %s7 = ssub.s32 1, %s5
  %s8 = scalar_select 0, %s7, %s5
  $region1: #{tpu_custom_call.1} parent=0
    #allocation4 [shape = 'u8[8192]{0}', space=vmem, size = 0x2000, scoped, tag = 'input window, operand 0, single buffered']
    #allocation5 [shape = 's32[1]{0}', space=sflag, size = 0x4, scoped, tag = 'scoped memory for tpu_custom_call.1']
    #allocation6 [shape = 's32[1]{0}', space=sflag, size = 0x4, scoped, tag = 'scoped memory for tpu_custom_call.1']
    #allocation7 [shape = 'u8[8192]{0}', space=vmem, size = 0x2000, scoped, tag = 'input window, operand 1, single buffered']
    #allocation8 [shape = 's32[1]{0}', space=sflag, size = 0x4, scoped, tag = 'scoped memory for tpu_custom_call.1']
    #allocation9 [shape = 'u8[4096]{0}', space=vmem, size = 0x1000, scoped, tag = 'output window, operand 0, single buffered']
    #allocation10 [shape = 'u8[4096]{0}', space=vmem, size = 0x1000, scoped, tag = 'output window, operand 1, single buffered']
    #allocation11 [shape = 's32[1]{0}', space=sflag, size = 0x4, scoped, tag = 'scoped memory for tpu_custom_call.1']
    %9 = vsyncpa [#allocation5], 0
    %10 = vsyncpa [#allocation8], 0
    %11 = vsyncpa [#allocation6], 0
    %12 = vsyncpa [#allocation11], 0
    // Predicated region
    $region2: #{tpu_custom_call.1} parent=1 // pred_check
      _
    $region3: #{tpu_custom_call.1} parent=1 // pred_check_branch
      %14 = sbr.rel (0) target = $region5
    $region4: #{tpu_custom_call.1} parent=1 // pred_region
      %s15 = sadd.s32 0, 0
      %p16 = scmp.lt.s32.totalorder %s15, 0
      %s17 = scalar_select %p16, %s15, 0
      %s18 = smul.u32 2, %s17
      %s20 = ssub.s32 256, 256
      %21 = vsyncadd [#allocation5], %s20
      %s22 = smul.addr %s18, 128
      %s23 = scalar_lea.hbm %s0, %s22
      %s24 = sshll.u32 [#allocation4], 4
      %s25 = int_to_ptr.vmem [resolvable:$true] %s24
      %30 = dma.hbm_to_vmem [thread:$0]  %s23, 256, %s25, [#allocation5], 128, 128, 8
    $region5: #{tpu_custom_call.1} parent=1 // pred_fallthru
      _
    // Predicated region
    $region6: #{tpu_custom_call.1} parent=1 // pred_check
      _
    $region7: #{tpu_custom_call.1} parent=1 // pred_check_branch
      %32 = sbr.rel (0) target = $region9
    $region8: #{tpu_custom_call.1} parent=1 // pred_region
      %s33 = sadd.s32 0, 0
      %p34 = scmp.lt.s32.totalorder %s33, 0
      %s35 = scalar_select %p34, %s33, 0
      %s36 = smul.u32 2, %s35
      %s38 = ssub.s32 256, 256
      %39 = vsyncadd [#allocation8], %s38
      %s40 = smul.addr %s36, 128
      %s41 = scalar_lea.hbm %s1, %s40
      %s42 = sshll.u32 [#allocation7], 4
      %s43 = int_to_ptr.vmem [resolvable:$true] %s42
      %48 = dma.hbm_to_vmem [thread:$0]  %s41, 256, %s43, [#allocation8], 128, 128, 8
    $region9: #{tpu_custom_call.1} parent=1 // pred_fallthru
      _
    // Predicated region
    $region10: #{tpu_custom_call.1} parent=1 // pred_check
      _
    $region11: #{tpu_custom_call.1} parent=1 // pred_check_branch
      %50 = sbr.rel (0) target = $region13
    $region12: #{tpu_custom_call.1} parent=1 // pred_region
      %51 = dma.done [#allocation5], 256
    $region13: #{tpu_custom_call.1} parent=1 // pred_fallthru
      _
    // Predicated region
    $region14: #{tpu_custom_call.1} parent=1 // pred_check
      _
    $region15: #{tpu_custom_call.1} parent=1 // pred_check_branch
      %53 = sbr.rel (0) target = $region17
    $region16: #{tpu_custom_call.1} parent=1 // pred_region
      %54 = dma.done [#allocation8], 256
    $region17: #{tpu_custom_call.1} parent=1 // pred_fallthru
      _
    %s55 = sadd.s32 0, 0
    %p56 = scmp.lt.s32.totalorder %s55, 0
    %s57 = scalar_select %p56, %s55, 0
    %s58 = smul.u32 2, %s57
    %s59 = sadd.s32 0, 0
    %p60 = scmp.lt.s32.totalorder %s59, 0
    %s61 = scalar_select %p60, %s59, 0
    %s62 = smul.u32 2, %s61
    %p63 = scmp.eq.s32.totalorder 0, 0
    // Predicated region
    $region18: #{tpu_custom_call.1} parent=1 // pred_check
      %p64 = pneg %p63
    $region19: #{tpu_custom_call.1} parent=1 // pred_check_branch
      %66 = sbr.rel (%p64) target = $region21
    $region20: #{tpu_custom_call.1} parent=1 // pred_region
      %67 = vst [vmem:[#allocation2] sm:$0xff] 0.0
      %68 = vst [vmem:[#allocation3] sm:$0xff] 0.0
    $region21: #{tpu_custom_call.1} parent=1 // pred_fallthru
      _
    %v69 = vld [vmem:[#allocation4] sm:$0xff]
    %v70 = vld [vmem:[#allocation4 + $0x8] sm:$0xff]
    %v71 = vld [vmem:[#allocation7] sm:$0xff]
    %v72 = vld [vmem:[#allocation7 + $0x8] sm:$0xff]
    %s73 = sadd.s32 0, 0
    %s74 = sadd.s32 %s73, 1
    %s75 = smul.u32 %s74, 16
    %p76 = scmp.gt.s32.totalorder %s75, 16
    %p77 = scmp.le.s32.totalorder %s75, 16
    // Predicated region
    $region22: #{tpu_custom_call.1} parent=1 // pred_check
      %p78 = pneg %p77
    $region23: #{tpu_custom_call.1} parent=1 // pred_check_branch
      %80 = sbr.rel (%p78) target = $region25
    $region24: #{tpu_custom_call.1} parent=1 // pred_region
      %vm81 = vcmp.lt.f32.partialorder %v71, 4.0
      %vm82 = vcmp.lt.f32.partialorder %v72, 4.0
      %v83 = vsub.f32 %v69, %v71
      %v84 = vsub.f32 %v70, %v72
      %v85 = vand.u32 2147483647, %v83
      %v86 = vand.u32 2147483647, %v84
      %vm87 = vcmp.lt.f32.partialorder %v85, 1.0
      %vm88 = vcmp.lt.f32.partialorder %v86, 1.0
      %v89 = vmul.f32 %v85, 0.5
      %v90 = vmul.f32 %v86, 0.5
      %v91 = vmul.f32 %v89, %v85
      %v92 = vmul.f32 %v90, %v86
      %v93 = vsub.f32 %v85, 0.5
      %v94 = vsub.f32 %v86, 0.5
      %v95 = vsel %vm87, %v91, %v93
      %v96 = vsel %vm88, %v92, %v94
      %v97 = vsel %vm81, %v95, 0.0
      %v98 = vsel %vm82, %v96, 0.0
      %v99 = vsel %vm81, 1.0, 0.0
      %v100 = vsel %vm82, 1.0, 0.0
      %v101 = vld [vmem:[#allocation2] sm:$0xff]
      %v102 = vadd.f32 %v97, %v98
      %v103 = vadd.f32 %v101, %v102
      %104 = vst [vmem:[#allocation2] sm:$0xff] %v103
      %v105 = vld [vmem:[#allocation3] sm:$0xff]
      %v106 = vadd.f32 %v99, %v100
      %v107 = vadd.f32 %v105, %v106
      %108 = vst [vmem:[#allocation3] sm:$0xff] %v107
    $region25: #{tpu_custom_call.1} parent=1 // pred_fallthru
      _
    // Predicated region
    $region26: #{tpu_custom_call.1} parent=1 // pred_check
      %p109 = pneg %p76
    $region27: #{tpu_custom_call.1} parent=1 // pred_check_branch
      %111 = sbr.rel (%p109) target = $region29
    $region28: #{tpu_custom_call.1} parent=1 // pred_region
      %v112 = vlaneseq
      %v113 = vshrl.u32 %v112, 7
      %v114 = vadd.s32 %v113, 8
      %s115 = smul.u32 %s73, 16
      %v116 = vstv %s115
      %v117 = vadd.s32 %v116, %v113
      %v118 = vadd.s32 %v116, %v114
      %vm119 = vcmp.lt.s32.totalorder %v117, 16
      %vm120 = vcmp.lt.s32.totalorder %v118, 16
      %vm121 = vcmp.lt.f32.partialorder %v71, 4.0
      %vm122 = vcmp.lt.f32.partialorder %v72, 4.0
      %vm123 = vmand %vm121, %vm119
      %vm124 = vmand %vm122, %vm120
      %v125 = vsub.f32 %v69, %v71
      %v126 = vsub.f32 %v70, %v72
      %v127 = vand.u32 2147483647, %v125
      %v128 = vand.u32 2147483647, %v126
      %vm129 = vcmp.lt.f32.partialorder %v127, 1.0
      %vm130 = vcmp.lt.f32.partialorder %v128, 1.0
      %v131 = vmul.f32 %v127, 0.5
      %v132 = vmul.f32 %v128, 0.5
      %v133 = vmul.f32 %v131, %v127
      %v134 = vmul.f32 %v132, %v128
      %v135 = vsub.f32 %v127, 0.5
      %v136 = vsub.f32 %v128, 0.5
      %v137 = vsel %vm129, %v133, %v135
      %v138 = vsel %vm130, %v134, %v136
      %v139 = vsel %vm123, %v137, 0.0
      %v140 = vsel %vm124, %v138, 0.0
      %v141 = vsel %vm123, 1.0, 0.0
      %v142 = vsel %vm124, 1.0, 0.0
      %v143 = vld [vmem:[#allocation2] sm:$0xff]
      %v144 = vadd.f32 %v139, %v140
      %v145 = vadd.f32 %v143, %v144
      %146 = vst [vmem:[#allocation2] sm:$0xff] %v145
      %v147 = vld [vmem:[#allocation3] sm:$0xff]
      %v148 = vadd.f32 %v141, %v142
      %v149 = vadd.f32 %v147, %v148
      %150 = vst [vmem:[#allocation3] sm:$0xff] %v149
    $region29: #{tpu_custom_call.1} parent=1 // pred_fallthru
      _
    // Predicated region
    $region30: #{tpu_custom_call.1} parent=1 // pred_check
      %p151 = pneg %p63
    $region31: #{tpu_custom_call.1} parent=1 // pred_check_branch
      %153 = sbr.rel (%p151) target = $region33
    $region32: #{tpu_custom_call.1} parent=1 // pred_region
      %v154 = vld [vmem:[#allocation2] sm:$0xff]
      %155 = vst [vmem:[#allocation9] sm:$0xff] %v154
      %v156 = vld [vmem:[#allocation3] sm:$0xff]
      %157 = vst [vmem:[#allocation10] sm:$0xff] %v156
    $region33: #{tpu_custom_call.1} parent=1 // pred_fallthru
      _
    // Predicated region
    $region34: #{tpu_custom_call.1} parent=1 // pred_check
      _
    $region35: #{tpu_custom_call.1} parent=1 // pred_check_branch
      %159 = sbr.rel (0) target = $region37
    $region36: #{tpu_custom_call.1} parent=1 // pred_region
      %s161 = ssub.s32 128, 128
      %162 = vsyncadd [#allocation6], %s161
      %s164 = sshll.u32 [#allocation9], 4
      %s165 = int_to_ptr.vmem [resolvable:$true] %s164
      %167 = dma.vmem_to_hbm [thread:$0]  %s165, 128, %s2, [#allocation6]
    $region37: #{tpu_custom_call.1} parent=1 // pred_fallthru
      _
    // Predicated region
    $region38: #{tpu_custom_call.1} parent=1 // pred_check
      _
    $region39: #{tpu_custom_call.1} parent=1 // pred_check_branch
      %169 = sbr.rel (0) target = $region41
    $region40: #{tpu_custom_call.1} parent=1 // pred_region
      %s171 = ssub.s32 128, 128
      %172 = vsyncadd [#allocation11], %s171
      %s174 = sshll.u32 [#allocation10], 4
      %s175 = int_to_ptr.vmem [resolvable:$true] %s174
      %177 = dma.vmem_to_hbm [thread:$0]  %s175, 128, %s3, [#allocation11]
    $region41: #{tpu_custom_call.1} parent=1 // pred_fallthru
      _
    // Predicated region
    $region42: #{tpu_custom_call.1} parent=1 // pred_check
      _
    $region43: #{tpu_custom_call.1} parent=1 // pred_check_branch
      %179 = sbr.rel (0) target = $region45
    $region44: #{tpu_custom_call.1} parent=1 // pred_region
      %180 = dma.done [#allocation6], 128
    $region45: #{tpu_custom_call.1} parent=1 // pred_fallthru
      _
    // Predicated region
    $region46: #{tpu_custom_call.1} parent=1 // pred_check
      _
    $region47: #{tpu_custom_call.1} parent=1 // pred_check_branch
      %182 = sbr.rel (0) target = $region49
    $region48: #{tpu_custom_call.1} parent=1 // pred_region
      %183 = dma.done [#allocation11], 128
    $region49: #{tpu_custom_call.1} parent=1 // pred_fallthru
      _
    %184 = vsyncpa [#allocation5], 1
    %185 = vsyncpa [#allocation8], 1
    %186 = vsyncpa [#allocation6], 1
    %187 = vsyncpa [#allocation11], 1

</llo_original>
